<compile_context>
chip_gen: v5e
topology: v5e:2x2
jax: 0.10.0
libtpu: 0.0.40
codegen_flags: <defaults>
</compile_context>

<pallas_src>
import functools

import jax
import jax.numpy as jnp
from jax import lax
from jax.experimental import pallas as pl
from jax.experimental.pallas import tpu as pltpu

_WEIGHT_BLOCK_CAP = 4 << 20   # ~4 MiB streamed weight blocks (double-buffered)
_VMEM_LIMIT = 32 << 20        # explicit scoped-VMEM limit; safe on v5e/v6e/v7x


def _pick_tile(dim, bytes_per_row, cap_bytes):
    """Largest 128-multiple divisor of `dim` whose (t, H) block fits cap_bytes.

    `dim` is padded to a multiple of 128 by the caller; falls back to 128.
    """
    best = 128
    for t in range(128, dim + 1, 128):
        if dim % t == 0 and t * bytes_per_row <= cap_bytes:
            best = max(best, t)
    return best


def _block_vmem_bytes(shape, dtype):
    """Layout-aware VMEM footprint of one buffer ((sublane, 128) tile rounding)."""
    itemsize = jnp.dtype(dtype).itemsize
    sublane = 8 * (4 // itemsize)          # 8 rows for f32, 16 for bf16
    rows, cols = shape[-2], shape[-1]
    lead = 1
    for d in shape[:-2]:
        lead *= d
    rows_p = -(-rows // sublane) * sublane
    cols_p = -(-cols // 128) * 128
    return lead * rows_p * cols_p * itemsize


def _attention_block_kernel(x_ref, w1_ref, b1_ref, w2_ref, b2_ref, o_ref,
                            h_ref, *, nk, tk, tn):
    """Fused AttentionBlock, phase-structured over a single sequential grid axis.

    i <  nk : h += x[:, k-block] @ W1[k-block]; finalize relu(h + b1) at nk-1.
              (h stays in an f32 VMEM scratch; never touches HBM.)
    i >= nk : out[:, n-block] = x[:, n-block] * sigmoid(h @ W2[n-block]^T + b2).
    """
    i = pl.program_id(0)

    @pl.when(i == 0)
    def _():
        h_ref[...] = jnp.zeros_like(h_ref)

    @pl.when(i < nk)
    def _():
        start = pl.multiple_of(i * tk, tk)
        xk = x_ref[:, pl.ds(start, tk)].astype(jnp.bfloat16)
        h_ref[...] += jnp.dot(xk, w1_ref[...],
                              preferred_element_type=jnp.float32)

    @pl.when(i == nk - 1)
    def _():
        h_ref[...] = jnp.maximum(h_ref[...] + b1_ref[...], 0.0)

    @pl.when(i >= nk)
    def _():
        start = pl.multiple_of((i - nk) * tn, tn)
        xg = x_ref[:, pl.ds(start, tn)]            # f32 gate operand
        hq = h_ref[...].astype(jnp.bfloat16)
        # W2 block is (tn, H), feature-major (contiguous in HBM). Contract the
        # last dims of both operands (== h @ W2_block^T) with f32 accumulation.
        z = lax.dot_general(hq, w2_ref[...],
                            dimension_numbers=(((1,), (1,)), ((), ())),
                            preferred_element_type=jnp.float32)
        z = z + b2_ref[...]
        o_ref[...] = (xg * jax.nn.sigmoid(z)).astype(o_ref.dtype)


def attention_block(x, w1, b1, w2, b2, *, block_cap_bytes=_WEIGHT_BLOCK_CAP):
    """out = x * sigmoid(relu(x @ w1 + b1) @ w2.T + b2).

    Weight layouts (chosen so every streamed block is one contiguous HBM DMA):
      w1: (in, hidden)  -- pre-transposed vs torch Linear(in, hidden).weight
      w2: (in, hidden)  -- torch-native Linear(hidden, in).weight layout
    Store weights in bfloat16: at small batch the kernel is HBM-bound on the
    weight stream, so bf16 halves the bytes; MXU accumulation stays f32.
    """
    B, K = x.shape
    K1, H = w1.shape
    N, H2 = w2.shape
    assert K1 == K and H2 == H and N == K and b1.shape == (H,) and b2.shape == (K,)

    x = x.astype(jnp.float32)
    w1 = w1.astype(jnp.bfloat16)
    w2 = w2.astype(jnp.bfloat16)
    b1 = b1.astype(jnp.float32)
    b2 = b2.astype(jnp.float32)

    # Pad the feature dim (K == N) to a lane multiple: every tile is lane-dense
    # (unmasked stores) and in-kernel pl.ds starts are 128-aligned.  Zero
    # padding is exact: padded x cols / W1 rows contribute 0 to h, and padded
    # output cols are gated by x_pad == 0 and sliced off below.
    Kp = -(-K // 128) * 128
    if Kp != K:
        pad = Kp - K
        x = jnp.pad(x, ((0, 0), (0, pad)))
        w1 = jnp.pad(w1, ((0, pad), (0, 0)))
        w2 = jnp.pad(w2, ((0, pad), (0, 0)))
        b2 = jnp.pad(b2, ((0, pad),))

    wbytes = 2  # bf16 weights
    tk = _pick_tile(Kp, H * wbytes, block_cap_bytes)   # W1 block: (tk, H)
    tn = _pick_tile(Kp, H * wbytes, block_cap_bytes)   # W2 block: (tn, H)
    nk, nn = Kp // tk, Kp // tn

    # Layout-aware VMEM budget check (rounds each buffer up to its (sublane,
    # 128) tiling) - fail loudly rather than spill/fault, esp. on v7x (64 MiB).
    vmem_est = (
        2 * _block_vmem_bytes((B, Kp), jnp.float32)        # resident x
        + 2 * _block_vmem_bytes((tk, H), jnp.bfloat16)     # W1 stream (dbl-buf)
        + 2 * _block_vmem_bytes((1, H), jnp.float32)       # b1
        + 2 * _block_vmem_bytes((tn, H), jnp.bfloat16)     # W2 stream (dbl-buf)
        + 2 * _block_vmem_bytes((1, tn), jnp.float32)      # b2
        + 2 * _block_vmem_bytes((B, tn), jnp.float32)      # output stream
        + _block_vmem_bytes((B, H), jnp.float32))          # h scratch
    if vmem_est > int(0.75 * _VMEM_LIMIT):
        raise ValueError(
            f"AttentionBlock tiling needs ~{vmem_est >> 20} MiB VMEM, over the "
            f"{int(0.75 * _VMEM_LIMIT) >> 20} MiB budget; lower block_cap_bytes.")

    b1r = b1.reshape(1, H)
    b2r = b2.reshape(1, Kp)

    # Phase-1 specs hold their last block during phase 2 (no re-fetch); phase-2
    # specs hold block 0 during phase 1: every weight byte crosses HBM once.
    in_specs = [
        pl.BlockSpec((B, Kp), lambda i: (0, 0)),                        # x resident
        pl.BlockSpec((tk, H), lambda i: (jnp.minimum(i, nk - 1), 0)),   # W1 stream
        pl.BlockSpec((1, H), lambda i: (0, 0)),                         # b1
        pl.BlockSpec((tn, H), lambda i: (jnp.maximum(i - nk, 0), 0)),   # W2 stream
        pl.BlockSpec((1, tn), lambda i: (0, jnp.maximum(i - nk, 0))),   # b2
    ]
    out_spec = pl.BlockSpec((B, tn), lambda i: (0, jnp.maximum(i - nk, 0)))

    out = pl.pallas_call(
        functools.partial(_attention_block_kernel, nk=nk, tk=tk, tn=tn),
        out_shape=jax.ShapeDtypeStruct((B, Kp), jnp.float32),
        grid=(nk + nn,),
        in_specs=in_specs,
        out_specs=out_spec,
        scratch_shapes=[pltpu.VMEM((B, H), jnp.float32)],
        compiler_params=pltpu.CompilerParams(
            # Phase 1 produces the VMEM-resident h that phase 2 consumes, so
            # the single grid axis is inherently sequential (no megacore).
            dimension_semantics=("arbitrary",),
            vmem_limit_bytes=_VMEM_LIMIT),
    )(x, w1, b1r, w2, b2r)
    return out[:, :K] if Kp != K else out


# ----------------------------------------------------------------------------
# Parameters, matching-precision pure-JAX reference and test harness
# ----------------------------------------------------------------------------
def init_attention_params(key, in_features):
    hidden = max(in_features // 8, 1)
    k1, k2, k3, k4 = jax.random.split(key, 4)
    # Weights are kept in bf16 (kernel streaming dtype); biases stay f32.
    return {
        "w1": (jax.random.normal(k1, (in_features, hidden), jnp.float32) * 0.05
               ).astype(jnp.bfloat16),
        "b1": jax.random.normal(k2, (hidden,), jnp.float32) * 0.01,
        "w2": (jax.random.normal(k3, (in_features, hidden), jnp.float32) * 0.05
               ).astype(jnp.bfloat16),
        "b2": jax.random.normal(k4, (in_features,), jnp.float32) * 0.01,
    }


def attention_block_ref(x, p):
    """Matching-precision reference: bf16 matmul operands, f32 accumulation."""
    q = lambda a: a.astype(jnp.bfloat16).astype(jnp.float32)
    w1 = p["w1"].astype(jnp.float32)   # stored bf16 -> exact upcast
    w2 = p["w2"].astype(jnp.float32)
    h = jnp.maximum(jnp.dot(q(x), w1, precision="highest") + p["b1"], 0.0)
    z = jnp.dot(q(h), w2.T, precision="highest") + p["b2"]
    return x * jax.nn.sigmoid(z)


@functools.partial(jax.jit, static_argnames=("block_cap_bytes",))
def forward(x, params, block_cap_bytes=_WEIGHT_BLOCK_CAP):
    return attention_block(x, params["w1"], params["b1"],
                           params["w2"], params["b2"],
                           block_cap_bytes=block_cap_bytes)


if __name__ == "__main__":
    key = jax.random.PRNGKey(0)
    cases = [
        (2, 256, _WEIGHT_BLOCK_CAP),    # hidden 32, single block per phase
        (2, 1408, _WEIGHT_BLOCK_CAP),   # hidden 176 (non-lane-multiple)
        (2, 100, _WEIGHT_BLOCK_CAP),    # odd width -> padded to 128, hidden 12
        (4, 4096, _WEIGHT_BLOCK_CAP),   # hidden 512, ~4 MiB weight blocks
        (4, 4096, 256 << 10),           # small cap: exercise multi-block stream
    ]
    for idx, (batch, feats, cap) in enumerate(cases):
        kp, kx = jax.random.split(jax.random.fold_in(key, idx))
        params = init_attention_params(kp, feats)
        x = jax.random.normal(kx, (batch, feats), jnp.float32)

        out = jax.block_until_ready(forward(x, params, block_cap_bytes=cap))
        assert out.shape == (batch, feats)

        ref = attention_block_ref(x, params)
        if not jnp.allclose(out, ref, rtol=2e-3, atol=2e-3):
            max_err = float(jnp.max(jnp.abs(out - ref)))
            raise AssertionError(
                f"mismatch vs reference for shape {(batch, feats)} "
                f"(cap={cap}): max abs err {max_err}")

    print("KERNEL_OK")
</pallas_src>

<mosaic_0001>
module attributes {stable_mosaic.version = 11 : i64} {
  func.func @_attention_block_kernel(%arg0: i32, %arg1: memref<2x256xf32, #tpu.memory_space<vmem>>, %arg2: memref<256x32xbf16, #tpu.memory_space<vmem>>, %arg3: memref<1x32xf32, #tpu.memory_space<vmem>>, %arg4: memref<256x32xbf16, #tpu.memory_space<vmem>>, %arg5: memref<1x256xf32, #tpu.memory_space<vmem>>, %arg6: memref<2x256xf32, #tpu.memory_space<vmem>>, %arg7: memref<2x32xf32, #tpu.memory_space<vmem>>) attributes {dimension_semantics = [#tpu.dimension_semantics<arbitrary>], iteration_bounds = array<i64: 2>, scalar_prefetch = 0 : i64, scratch_operands = 1 : i64, tpu.core_type = #tpu.core_type<tc>, window_params = [{pipeline_mode = #tpu.pipeline_mode<synchronous>, transform_indices = @transform_0, window_bounds = array<i64: 2, 256>}, {transform_indices = @transform_1, window_bounds = array<i64: 256, 32>}, {pipeline_mode = #tpu.pipeline_mode<synchronous>, transform_indices = @transform_2, window_bounds = array<i64: 1, 32>}, {transform_indices = @transform_3, window_bounds = array<i64: 256, 32>}, {transform_indices = @transform_4, window_bounds = array<i64: 1, 256>}, {transform_indices = @transform_5, window_bounds = array<i64: 2, 256>}]} {
    %c0_i32 = arith.constant 0 : i32
    %0 = arith.cmpi eq, %arg0, %c0_i32 : i32
    %1 = arith.extui %0 : i1 to i32
    %c0_i32_0 = arith.constant 0 : i32
    %2 = arith.cmpi ne, %1, %c0_i32_0 : i32
    scf.if %2 {
      %cst = arith.constant 0.000000e+00 : f32
      %12 = vector.broadcast %cst : f32 to vector<2x32xf32>
      %c0 = arith.constant 0 : index
      %c0_6 = arith.constant 0 : index
      %13 = vector.load %arg7[%c0, %c0_6] : memref<2x32xf32, #tpu.memory_space<vmem>>, vector<2x32xf32>
      tpu.vector_store %arg7[%c0, %c0_6], %12 {strides = array<i32>} : memref<2x32xf32, #tpu.memory_space<vmem>>, vector<2x32xf32>,
    } else {
    }
    %c1_i32 = arith.constant 1 : i32
    %3 = arith.cmpi slt, %arg0, %c1_i32 : i32
    %4 = arith.extui %3 : i1 to i32
    %c0_i32_1 = arith.constant 0 : i32
    %5 = arith.cmpi ne, %4, %c0_i32_1 : i32
    scf.if %5 {
      %c256_i32 = arith.constant 256 : i32
      %12 = arith.muli %arg0, %c256_i32 : i32
      %13 = tpu.assume_multiple %12, 256 : i32
      %c0 = arith.constant 0 : index
      %14 = arith.index_cast %13 : i32 to index
      %15 = vector.load %arg1[%c0, %14] : memref<2x256xf32, #tpu.memory_space<vmem>>, vector<2x256xf32>
      %16 = arith.truncf %15 : vector<2x256xf32> to vector<2x256xbf16>
      %c0_6 = arith.constant 0 : index
      %c0_7 = arith.constant 0 : index
      %17 = vector.load %arg7[%c0_6, %c0_7] : memref<2x32xf32, #tpu.memory_space<vmem>>, vector<2x32xf32>
      %c0_8 = arith.constant 0 : index
      %c0_9 = arith.constant 0 : index
      %18 = vector.load %arg2[%c0_8, %c0_9] : memref<256x32xbf16, #tpu.memory_space<vmem>>, vector<256x32xbf16>
      %cst = arith.constant dense<0.000000e+00> : vector<2x32xf32>
      %19 = tpu.matmul %16, %18, %cst {dimension_numbers = #tpu.dot_dimension_numbers<[1], [0], [0], [1], [0, 0, 1, 1], [], []>} : vector<2x256xbf16>, vector<256x32xbf16>, vector<2x32xf32> -> vector<2x32xf32>
      %20 = arith.addf %17, %19 : vector<2x32xf32>
      %c0_10 = arith.constant 0 : index
      %c0_11 = arith.constant 0 : index
      %21 = vector.load %arg7[%c0_10, %c0_11] : memref<2x32xf32, #tpu.memory_space<vmem>>, vector<2x32xf32>
      tpu.vector_store %arg7[%c0_10, %c0_11], %20 {strides = array<i32>} : memref<2x32xf32, #tpu.memory_space<vmem>>, vector<2x32xf32>,
    } else {
    }
    %c0_i32_2 = arith.constant 0 : i32
    %6 = arith.cmpi eq, %arg0, %c0_i32_2 : i32
    %7 = arith.extui %6 : i1 to i32
    %c0_i32_3 = arith.constant 0 : i32
    %8 = arith.cmpi ne, %7, %c0_i32_3 : i32
    scf.if %8 {
      %c0 = arith.constant 0 : index
      %c0_6 = arith.constant 0 : index
      %12 = vector.load %arg7[%c0, %c0_6] : memref<2x32xf32, #tpu.memory_space<vmem>>, vector<2x32xf32>
      %c0_7 = arith.constant 0 : index
      %c0_8 = arith.constant 0 : index
      %13 = vector.load %arg3[%c0_7, %c0_8] : memref<1x32xf32, #tpu.memory_space<vmem>>, vector<1x32xf32>
      %14 = vector.broadcast %13 : vector<1x32xf32> to vector<2x32xf32>
      %15 = arith.addf %12, %14 : vector<2x32xf32>
      %cst = arith.constant 0.000000e+00 : f32
      %16 = vector.broadcast %cst : f32 to vector<2x32xf32>
      %17 = arith.maximumf %15, %16 : vector<2x32xf32>
      %c0_9 = arith.constant 0 : index
      %c0_10 = arith.constant 0 : index
      %18 = vector.load %arg7[%c0_9, %c0_10] : memref<2x32xf32, #tpu.memory_space<vmem>>, vector<2x32xf32>
      tpu.vector_store %arg7[%c0_9, %c0_10], %17 {strides = array<i32>} : memref<2x32xf32, #tpu.memory_space<vmem>>, vector<2x32xf32>,
    } else {
    }
    %c1_i32_4 = arith.constant 1 : i32
    %9 = arith.cmpi sge, %arg0, %c1_i32_4 : i32
    %10 = arith.extui %9 : i1 to i32
    %c0_i32_5 = arith.constant 0 : i32
    %11 = arith.cmpi ne, %10, %c0_i32_5 : i32
    scf.if %11 {
      %c1_i32_6 = arith.constant 1 : i32
      %12 = arith.subi %arg0, %c1_i32_6 : i32
      %c256_i32 = arith.constant 256 : i32
      %13 = arith.muli %12, %c256_i32 : i32
      %14 = tpu.assume_multiple %13, 256 : i32
      %c0 = arith.constant 0 : index
      %15 = arith.index_cast %14 : i32 to index
      %16 = vector.load %arg1[%c0, %15] : memref<2x256xf32, #tpu.memory_space<vmem>>, vector<2x256xf32>
      %c0_7 = arith.constant 0 : index
      %c0_8 = arith.constant 0 : index
      %17 = vector.load %arg7[%c0_7, %c0_8] : memref<2x32xf32, #tpu.memory_space<vmem>>, vector<2x32xf32>
      %18 = arith.truncf %17 : vector<2x32xf32> to vector<2x32xbf16>
      %c0_9 = arith.constant 0 : index
      %c0_10 = arith.constant 0 : index
      %19 = vector.load %arg4[%c0_9, %c0_10] : memref<256x32xbf16, #tpu.memory_space<vmem>>, vector<256x32xbf16>
      %cst = arith.constant dense<0.000000e+00> : vector<2x256xf32>
      %20 = tpu.matmul %18, %19, %cst {dimension_numbers = #tpu.dot_dimension_numbers<[1], [1], [0], [0], [0, 0, 1, 0], [], []>} : vector<2x32xbf16>, vector<256x32xbf16>, vector<2x256xf32> -> vector<2x256xf32>
      %c0_11 = arith.constant 0 : index
      %c0_12 = arith.constant 0 : index
      %21 = vector.load %arg5[%c0_11, %c0_12] : memref<1x256xf32, #tpu.memory_space<vmem>>, vector<1x256xf32>
      %22 = vector.broadcast %21 : vector<1x256xf32> to vector<2x256xf32>
      %23 = arith.addf %20, %22 : vector<2x256xf32>
      %24 = arith.negf %23 : vector<2x256xf32>
      %25 = math.exp %24 : vector<2x256xf32>
      %cst_13 = arith.constant 1.000000e+00 : f32
      %26 = vector.broadcast %cst_13 : f32 to vector<2x256xf32>
      %27 = arith.addf %26, %25 : vector<2x256xf32>
      %28 = arith.divf %26, %27 : vector<2x256xf32>
      %29 = arith.mulf %16, %28 : vector<2x256xf32>
      %c0_14 = arith.constant 0 : index
      %c0_15 = arith.constant 0 : index
      %30 = vector.load %arg6[%c0_14, %c0_15] : memref<2x256xf32, #tpu.memory_space<vmem>>, vector<2x256xf32>
      tpu.vector_store %arg6[%c0_14, %c0_15], %29 {strides = array<i32>} : memref<2x256xf32, #tpu.memory_space<vmem>>, vector<2x256xf32>,
    } else {
    }
    return
  }
  func.func @transform_0(%arg0: i32) -> (i32, i32) {
    %c0_i32 = arith.constant 0 : i32
    %c0_i32_0 = arith.constant 0 : i32
    %c0_i32_1 = arith.constant 0 : i32
    return %c0_i32, %c0_i32_0 : i32, i32
  }
  func.func @transform_1(%arg0: i32) -> (i32, i32) {
    %c0_i32 = arith.constant 0 : i32
    %0 = arith.minsi %arg0, %c0_i32 : i32
    %c0_i32_0 = arith.constant 0 : i32
    %c0_i32_1 = arith.constant 0 : i32
    return %0, %c0_i32_0 : i32, i32
  }
  func.func @transform_2(%arg0: i32) -> (i32, i32) {
    %c0_i32 = arith.constant 0 : i32
    %c0_i32_0 = arith.constant 0 : i32
    %c0_i32_1 = arith.constant 0 : i32
    return %c0_i32, %c0_i32_0 : i32, i32
  }
  func.func @transform_3(%arg0: i32) -> (i32, i32) {
    %c1_i32 = arith.constant 1 : i32
    %0 = arith.subi %arg0, %c1_i32 : i32
    %c0_i32 = arith.constant 0 : i32
    %1 = arith.maxsi %0, %c0_i32 : i32
    %c0_i32_0 = arith.constant 0 : i32
    %c0_i32_1 = arith.constant 0 : i32
    return %1, %c0_i32_0 : i32, i32
  }
  func.func @transform_4(%arg0: i32) -> (i32, i32) {
    %c1_i32 = arith.constant 1 : i32
    %0 = arith.subi %arg0, %c1_i32 : i32
    %c0_i32 = arith.constant 0 : i32
    %1 = arith.maxsi %0, %c0_i32 : i32
    %c0_i32_0 = arith.constant 0 : i32
    %c0_i32_1 = arith.constant 0 : i32
    return %c0_i32_0, %1 : i32, i32
  }
  func.func @transform_5(%arg0: i32) -> (i32, i32) {
    %c1_i32 = arith.constant 1 : i32
    %0 = arith.subi %arg0, %c1_i32 : i32
    %c0_i32 = arith.constant 0 : i32
    %1 = arith.maxsi %0, %c0_i32 : i32
    %c0_i32_0 = arith.constant 0 : i32
    %c0_i32_1 = arith.constant 0 : i32
    return %c0_i32_0, %1 : i32, i32
  }
}

</mosaic_0001>

<llo_original>
// kernel: forward.1
$region0: #{forward.1}
  #allocation0 [shape = 'u32[]', space=smem, size = 0x4, offset = 0x4, fixed_abs, tag = 'smem constant byte address 0x4 - core index']
  #allocation1 [shape = 'u32[72,128]{1,0:T(1,128)}', space=vmem, size = 0x9000, scoped, tag = 'internal scratch']
  #allocation2 [shape = 'f32[2,32]{1,0:T(2,128)}', space=vmem, size = 0x400, scoped, tag = 'scratch operand']
  %s0 = inlined_call_operand.vmem [shape: f32[2,256], index: 0, kind: input, shape index: {}]
  %s1 = inlined_call_operand.vmem [shape: bf16[256,32], index: 1, kind: input, shape index: {}]
  %s2 = inlined_call_operand.vmem [shape: f32[1,32], index: 2, kind: input, shape index: {}]
  %s3 = inlined_call_operand.vmem [shape: bf16[256,32], index: 3, kind: input, shape index: {}]
  %s4 = inlined_call_operand.vmem [shape: f32[1,256], index: 4, kind: input, shape index: {}]
  %s5 = inlined_call_operand.hbm [shape: f32[2,256], index: 5, kind: output, shape index: {}]
  %s6 = sld [smem:[#allocation0]]
  $region69: #{forward.1} parent=0
    _
  %s8 = ssub.s32 1, %s6
  %s9 = scalar_select 0, %s8, %s6
  $region1: #{forward.1} parent=0
    #allocation3 [shape = 'u8[4096]{0}', space=vmem, size = 0x1000, scoped, tag = 'output window, operand 0']
    #allocation4 [shape = 's32[2]{0}', space=sflag, size = 0x8, scoped, tag = 'scoped memory for forward.1']
    %10 = vsyncpa [#allocation4], 0
    %s11 = scalar_lea.sflag [#allocation4], 1
    %12 = vsyncpa %s11, 0
    loop: start=0, step=1, limit=4
    $region2: #{forward.1} parent=1 // loop_pre_header
      _
    $region3: #{forward.1} parent=1 // loop_header
      %s14 = sphi 0, %s18
      %p15 = scmp.ge.s32.totalorder %s14, 4
      %s22 = sphi 0, %s22
      %s24 = sphi 0, %s22
      %s25 = sphi 0, %s24
      %s39 = sphi 0, %s25
      %s49 = sphi 0, %s51
      %s52 = sphi 0, %s49
      %s53 = sphi 0, %s52
      %s69 = sphi 0, %s53
      %s73 = sphi 0, %s73
      %s75 = sphi 0, %s73
      %s76 = sphi 0, %s75
      %s90 = sphi 0, %s76
      %s102 = sphi 0, %s104
      %s105 = sphi 0, %s102
      %s106 = sphi 0, %s105
      %s122 = sphi 0, %s106
      %s134 = sphi 0, %s136
      %s137 = sphi 0, %s134
      %s138 = sphi 0, %s137
      %s154 = sphi 0, %s138
      %s166 = sphi 0, %s168
      %s169 = sphi 0, %s166
      %s170 = sphi 0, %s169
      %s186 = sphi 0, %s170
    $region4: #{forward.1} parent=1 // loop_header_branch
      %17 = sbr.rel (%p15) target = $region8
    $region5: #{forward.1} parent=1 // loop_body
      %s19 = ssub.s32 %s14, 1
      %s20 = ssub.s32 %s14, 2
      %s21 = sadd.s32 %s14, 1
      %s23 = sadd.s32 %s22, 1
      %p26 = scmp.eq.s32.totalorder %s14, 1
      %p27 = scmp.ne.s32.totalorder %s22, %s24
      %p28 = scmp.eq.s32.totalorder %s14, 0
      %p29 = por %p27, %p28
      %p30 = scmp.ne.s32.totalorder %s22, %s24
      %p31 = scmp.eq.s32.totalorder %s19, 1
      %p32 = por %p30, %p31
      %p33 = scmp.ne.s32.totalorder %s24, %s25
      %p34 = scmp.eq.s32.totalorder %s19, 0
      %p35 = por %p33, %p34
      %p36 = scmp.ne.s32.totalorder %s24, %s25
      %p37 = scmp.eq.s32.totalorder %s20, 1
      %p38 = por %p36, %p37
      %p40 = scmp.ne.s32.totalorder %s25, %s39
      %p41 = scmp.eq.s32.totalorder %s20, 0
      %p42 = por %p40, %p41
      %p43 = scmp.lt.s32.totalorder %s14, 0
      %s44 = scalar_select %p43, %s14, 0
      %p45 = scmp.lt.s32.totalorder %s21, 0
      %s46 = scalar_select %p45, %s21, 0
      %s47 = ssub.s32 %s44, %s46
      %p48 = scmp.eq.s32.totalorder %s47, 0
      %s50 = sadd.s32 %s49, 1
      %s51 = scalar_select %p48, %s49, %s50
      %p54 = pneg %p48
      %p55 = scmp.eq.s32.totalorder %s14, 1
      %p56 = por %p54, %p55
      %p57 = scmp.ne.s32.totalorder %s49, %s52
      %p58 = scmp.eq.s32.totalorder %s14, 0
      %p59 = por %p57, %p58
      %p60 = scmp.ne.s32.totalorder %s49, %s52
      %p61 = scmp.eq.s32.totalorder %s19, 1
      %p62 = por %p60, %p61
      %p63 = scmp.ne.s32.totalorder %s52, %s53
      %p64 = scmp.eq.s32.totalorder %s19, 0
      %p65 = por %p63, %p64
      %p66 = scmp.ne.s32.totalorder %s52, %s53
      %p67 = scmp.eq.s32.totalorder %s20, 1
      %p68 = por %p66, %p67
      %p70 = scmp.ne.s32.totalorder %s53, %s69
      %p71 = scmp.eq.s32.totalorder %s20, 0
      %p72 = por %p70, %p71
      %s74 = sadd.s32 %s73, 1
      %p77 = scmp.eq.s32.totalorder %s14, 1
      %p78 = scmp.ne.s32.totalorder %s73, %s75
      %p79 = scmp.eq.s32.totalorder %s14, 0
      %p80 = por %p78, %p79
      %p81 = scmp.ne.s32.totalorder %s73, %s75
      %p82 = scmp.eq.s32.totalorder %s19, 1
      %p83 = por %p81, %p82
      %p84 = scmp.ne.s32.totalorder %s75, %s76
      %p85 = scmp.eq.s32.totalorder %s19, 0
      %p86 = por %p84, %p85
      %p87 = scmp.ne.s32.totalorder %s75, %s76
      %p88 = scmp.eq.s32.totalorder %s20, 1
      %p89 = por %p87, %p88
      %p91 = scmp.ne.s32.totalorder %s76, %s90
      %p92 = scmp.eq.s32.totalorder %s20, 0
      %p93 = por %p91, %p92
      %s94 = ssub.s32 %s14, 1
      %p95 = scmp.gt.s32.totalorder %s94, 0
      %s96 = scalar_select %p95, %s94, 0
      %s97 = ssub.s32 %s21, 1
      %p98 = scmp.gt.s32.totalorder %s97, 0
      %s99 = scalar_select %p98, %s97, 0
      %s100 = ssub.s32 %s96, %s99
      %p101 = scmp.eq.s32.totalorder %s100, 0
      %s103 = sadd.s32 %s102, 1
      %s104 = scalar_select %p101, %s102, %s103
      %p107 = pneg %p101
      %p108 = scmp.eq.s32.totalorder %s14, 1
      %p109 = por %p107, %p108
      %p110 = scmp.ne.s32.totalorder %s102, %s105
      %p111 = scmp.eq.s32.totalorder %s14, 0
      %p112 = por %p110, %p111
      %p113 = scmp.ne.s32.totalorder %s102, %s105
      %p114 = scmp.eq.s32.totalorder %s19, 1
      %p115 = por %p113, %p114
      %p116 = scmp.ne.s32.totalorder %s105, %s106
      %p117 = scmp.eq.s32.totalorder %s19, 0
      %p118 = por %p116, %p117
      %p119 = scmp.ne.s32.totalorder %s105, %s106
      %p120 = scmp.eq.s32.totalorder %s20, 1
      %p121 = por %p119, %p120
      %p123 = scmp.ne.s32.totalorder %s106, %s122
      %p124 = scmp.eq.s32.totalorder %s20, 0
      %p125 = por %p123, %p124
      %s126 = ssub.s32 %s14, 1
      %p127 = scmp.gt.s32.totalorder %s126, 0
      %s128 = scalar_select %p127, %s126, 0
      %s129 = ssub.s32 %s21, 1
      %p130 = scmp.gt.s32.totalorder %s129, 0
      %s131 = scalar_select %p130, %s129, 0
      %s132 = ssub.s32 %s128, %s131
      %p133 = scmp.eq.s32.totalorder %s132, 0
      %s135 = sadd.s32 %s134, 1
      %s136 = scalar_select %p133, %s134, %s135
      %p139 = pneg %p133
      %p140 = scmp.eq.s32.totalorder %s14, 1
      %p141 = por %p139, %p140
      %p142 = scmp.ne.s32.totalorder %s134, %s137
      %p143 = scmp.eq.s32.totalorder %s14, 0
      %p144 = por %p142, %p143
      %p145 = scmp.ne.s32.totalorder %s134, %s137
      %p146 = scmp.eq.s32.totalorder %s19, 1
      %p147 = por %p145, %p146
      %p148 = scmp.ne.s32.totalorder %s137, %s138
      %p149 = scmp.eq.s32.totalorder %s19, 0
      %p150 = por %p148, %p149
      %p151 = scmp.ne.s32.totalorder %s137, %s138
      %p152 = scmp.eq.s32.totalorder %s20, 1
      %p153 = por %p151, %p152
      %p155 = scmp.ne.s32.totalorder %s138, %s154
      %p156 = scmp.eq.s32.totalorder %s20, 0
      %p157 = por %p155, %p156
      %s158 = ssub.s32 %s14, 1
      %p159 = scmp.gt.s32.totalorder %s158, 0
      %s160 = scalar_select %p159, %s158, 0
      %s161 = ssub.s32 %s21, 1
      %p162 = scmp.gt.s32.totalorder %s161, 0
      %s163 = scalar_select %p162, %s161, 0
      %s164 = ssub.s32 %s160, %s163
      %p165 = scmp.eq.s32.totalorder %s164, 0
      %s167 = sadd.s32 %s166, 1
      %s168 = scalar_select %p165, %s166, %s167
      %p171 = pneg %p165
      %p172 = scmp.eq.s32.totalorder %s14, 1
      %p173 = por %p171, %p172
      %p174 = scmp.ne.s32.totalorder %s166, %s169
      %p175 = scmp.eq.s32.totalorder %s14, 0
      %p176 = por %p174, %p175
      %p177 = scmp.ne.s32.totalorder %s166, %s169
      %p178 = scmp.eq.s32.totalorder %s19, 1
      %p179 = por %p177, %p178
      %p180 = scmp.ne.s32.totalorder %s169, %s170
      %p181 = scmp.eq.s32.totalorder %s19, 0
      %p182 = por %p180, %p181
      %p183 = scmp.ne.s32.totalorder %s169, %s170
      %p184 = scmp.eq.s32.totalorder %s20, 1
      %p185 = por %p183, %p184
      %p187 = scmp.ne.s32.totalorder %s170, %s186
      %p188 = scmp.eq.s32.totalorder %s20, 0
      %p189 = por %p187, %p188
      %p190 = scmp.le.s32.totalorder 1, %s14
      %p191 = scmp.lt.s32.totalorder %s14, 3
      %p192 = pnand %p190, %p191
      %p193 = pneg %p192
      // Predicated region
      $region9: #{forward.1} parent=5 // pred_check
        _
      $region10: #{forward.1} parent=5 // pred_check_branch
        %195 = sbr.rel (%p192) target = $region12
      $region11: #{forward.1} parent=5 // pred_region
        %s196 = ssub.s32 %s14, 1
        // Predicated region
        $region13: #{forward.1} parent=11 // pred_check
          %p197 = pneg %p35
        $region14: #{forward.1} parent=11 // pred_check_branch
          %199 = sbr.rel (%p197) target = $region16
        $region15: #{forward.1} parent=11 // pred_region
          _
        $region16: #{forward.1} parent=11 // pred_fallthru
          _
        // Predicated region
        $region17: #{forward.1} parent=11 // pred_check
          %p200 = pneg %p86
        $region18: #{forward.1} parent=11 // pred_check_branch
          %202 = sbr.rel (%p200) target = $region20
        $region19: #{forward.1} parent=11 // pred_region
          _
        $region20: #{forward.1} parent=11 // pred_fallthru
          _
      $region12: #{forward.1} parent=5 // pred_fallthru
        _
      %p203 = scmp.lt.s32.totalorder %s14, 2
      // Predicated region
      $region21: #{forward.1} parent=5 // pred_check
        %p204 = pneg %p203
      $region22: #{forward.1} parent=5 // pred_check_branch
        %206 = sbr.rel (%p204) target = $region24
      $region23: #{forward.1} parent=5 // pred_region
        // Predicated region
        $region25: #{forward.1} parent=23 // pred_check
          %p207 = pneg %p59
        $region26: #{forward.1} parent=23 // pred_check_branch
          %209 = sbr.rel (%p207) target = $region28
        $region27: #{forward.1} parent=23 // pred_region
          %p210 = scmp.lt.s32.totalorder %s14, 0
          %s211 = scalar_select %p210, %s14, 0
          %s212 = smul.u32 32, %s211
          %p213 = scmp.lt.s32.totalorder %s212, 31
          %s214 = scalar_select %p213, %s212, 31
          %s215 = smul.addr %s214, 4
          %s216 = scalar_lea.vmem %s1, %s215
          %p217 = scmp.lt.s32.totalorder %s14, 0
          %s218 = scalar_select %p217, %s14, 0
          %s219 = smul.u32 32, %s218
        $region28: #{forward.1} parent=23 // pred_fallthru
          _
        // Predicated region
        $region29: #{forward.1} parent=23 // pred_check
          %p220 = pneg %p112
        $region30: #{forward.1} parent=23 // pred_check_branch
          %222 = sbr.rel (%p220) target = $region32
        $region31: #{forward.1} parent=23 // pred_region
          %s223 = ssub.s32 %s14, 1
          %p224 = scmp.gt.s32.totalorder %s223, 0
          %s225 = scalar_select %p224, %s223, 0
          %s226 = smul.u32 32, %s225
          %p227 = scmp.lt.s32.totalorder %s226, 31
          %s228 = scalar_select %p227, %s226, 31
          %s229 = smul.addr %s228, 4
          %s230 = scalar_lea.vmem %s3, %s229
          %s231 = ssub.s32 %s14, 1
          %p232 = scmp.gt.s32.totalorder %s231, 0
          %s233 = scalar_select %p232, %s231, 0
          %s234 = smul.u32 32, %s233
        $region32: #{forward.1} parent=23 // pred_fallthru
          _
        // Predicated region
        $region33: #{forward.1} parent=23 // pred_check
          %p235 = pneg %p144
        $region34: #{forward.1} parent=23 // pred_check_branch
          %237 = sbr.rel (%p235) target = $region36
        $region35: #{forward.1} parent=23 // pred_region
          %s238 = ssub.s32 %s14, 1
          %p239 = scmp.gt.s32.totalorder %s238, 0
          %s240 = scalar_select %p239, %s238, 0
          %s241 = smul.u32 2, %s240
          %p242 = scmp.lt.s32.totalorder %s241, 1
          %s243 = scalar_select %p242, %s241, 1
          %s244 = scalar_lea.vmem %s4, %s243
          %s245 = ssub.s32 %s14, 1
          %p246 = scmp.gt.s32.totalorder %s245, 0
          %s247 = scalar_select %p246, %s245, 0
          %s248 = smul.u32 2, %s247
        $region36: #{forward.1} parent=23 // pred_fallthru
          _
      $region24: #{forward.1} parent=5 // pred_fallthru
        _
      %p249 = scmp.le.s32.totalorder 1, %s14
      %p250 = scmp.lt.s32.totalorder %s14, 3
      %p251 = pnand %p249, %p250
      %p252 = pneg %p251
      // Predicated region
      $region37: #{forward.1} parent=5 // pred_check
        _
      $region38: #{forward.1} parent=5 // pred_check_branch
        %254 = sbr.rel (%p251) target = $region40
      $region39: #{forward.1} parent=5 // pred_region
        %s255 = ssub.s32 %s14, 1
        %p256 = pneg %p35
        %p257 = pneg %p32
        %p258 = scmp.lt.s32.totalorder %s19, 0
        %s259 = scalar_select %p258, %s19, 0
        %s260 = smul.u32 32, %s259
        %p261 = scmp.lt.s32.totalorder %s260, 31
        %s262 = scalar_select %p261, %s260, 31
        %s263 = smul.addr %s262, 4
        %s264 = scalar_lea.vmem %s1, %s263
        %p265 = pneg %p65
        %p266 = pneg %p62
        %p267 = pneg %p86
        %p268 = pneg %p83
        %s269 = ssub.s32 %s19, 1
        %p270 = scmp.gt.s32.totalorder %s269, 0
        %s271 = scalar_select %p270, %s269, 0
        %s272 = smul.u32 32, %s271
        %p273 = scmp.lt.s32.totalorder %s272, 31
        %s274 = scalar_select %p273, %s272, 31
        %s275 = smul.addr %s274, 4
        %s276 = scalar_lea.vmem %s3, %s275
        %p277 = pneg %p118
        %p278 = pneg %p115
        %s279 = ssub.s32 %s19, 1
        %p280 = scmp.gt.s32.totalorder %s279, 0
        %s281 = scalar_select %p280, %s279, 0
        %s282 = smul.u32 2, %s281
        %p283 = scmp.lt.s32.totalorder %s282, 1
        %s284 = scalar_select %p283, %s282, 1
        %s285 = scalar_lea.vmem %s4, %s284
        %p286 = pneg %p150
        %p287 = pneg %p147
        %p288 = pneg %p182
        %p289 = pneg %p179
        %s290 = sand.u32 %s169, 1
        %s291 = scalar_lea.sflag [#allocation4], %s290
        %s292 = sand.u32 %s169, 1
        %s293 = smul.addr %s292, 4
        %s294 = scalar_lea.vmem [#allocation3], %s293
        %p295 = scmp.lt.s32.totalorder %s19, 0
        %s296 = scalar_select %p295, %s19, 0
        %s297 = smul.u32 32, %s296
        %p298 = scmp.lt.s32.totalorder %s297, 31
        %s299 = scalar_select %p298, %s297, 31
        %s300 = smul.addr %s299, 4
        %s301 = scalar_lea.vmem %s1, %s300
        %p302 = scmp.lt.s32.totalorder %s19, 0
        %s303 = scalar_select %p302, %s19, 0
        %s304 = smul.u32 32, %s303
        %s305 = ssub.s32 %s19, 1
        %p306 = scmp.gt.s32.totalorder %s305, 0
        %s307 = scalar_select %p306, %s305, 0
        %s308 = smul.u32 32, %s307
        %p309 = scmp.lt.s32.totalorder %s308, 31
        %s310 = scalar_select %p309, %s308, 31
        %s311 = smul.addr %s310, 4
        %s312 = scalar_lea.vmem %s3, %s311
        %s313 = ssub.s32 %s19, 1
        %p314 = scmp.gt.s32.totalorder %s313, 0
        %s315 = scalar_select %p314, %s313, 0
        %s316 = smul.u32 32, %s315
        %s317 = ssub.s32 %s19, 1
        %p318 = scmp.gt.s32.totalorder %s317, 0
        %s319 = scalar_select %p318, %s317, 0
        %s320 = smul.u32 2, %s319
        %p321 = scmp.lt.s32.totalorder %s320, 1
        %s322 = scalar_select %p321, %s320, 1
        %s323 = scalar_lea.vmem %s4, %s322
        %s324 = ssub.s32 %s19, 1
        %p325 = scmp.gt.s32.totalorder %s324, 0
        %s326 = scalar_select %p325, %s324, 0
        %s327 = smul.u32 2, %s326
        %s328 = ssub.s32 %s19, 1
        %p329 = scmp.gt.s32.totalorder %s328, 0
        %s330 = scalar_select %p329, %s328, 0
        %s331 = smul.u32 2, %s330
        %p332 = scmp.eq.s32.totalorder %s19, 0
        // Predicated region
        $region41: #{forward.1} parent=39 // pred_check
          %p333 = pneg %p332
        $region42: #{forward.1} parent=39 // pred_check_branch
          %335 = sbr.rel (%p333) target = $region44
        $region43: #{forward.1} parent=39 // pred_region
          %vm336 = vcmask 254976
          %337 = vst.msk [vmem:[#allocation2] sm:$0x3] %vm336, 0.0
        $region44: #{forward.1} parent=39 // pred_fallthru
          _
        %p338 = scmp.lt.s32.totalorder %s19, 1
        // Predicated region
        $region45: #{forward.1} parent=39 // pred_check
          %p339 = pneg %p338
        $region46: #{forward.1} parent=39 // pred_check_branch
          %341 = sbr.rel (%p339) target = $region48
        $region47: #{forward.1} parent=39 // pred_region
          %s342 = smul.u32 %s19, 256
          %s343 = sshra.s32 %s342, 7
          %s344 = sand.u32 %s342, 127
          %s345 = smul.addr %s343, 2
          %s346 = scalar_lea.vmem %s0, %s345
          %v347 = vld [vmem:[%s346] sm:$0xf]
          %349 = vst [vmem:[#allocation1] ss:$4 sm:$0xff] %v347
          %v350 = vld.sshfl [vmem:[#allocation1] sm:$0xff pattern:$0x73625140]
          %v351 = vld.sshfl [vmem:[#allocation1 + $0x8] sm:$0xff pattern:$0x73625140]
          %v354 = vpack.c.bf16 %v350, %v350
          %v355 = vpack.c.bf16 %v351, %v351
          %v356 = vld [vmem:[#allocation2] sm:$0x3]
          %v357 = vld [vmem:[%s301] sm:$0xf]
          %v358 = vld [vmem:[%s301 + $0x4] sm:$0xf]
          %v359 = vld [vmem:[%s301 + $0x8] sm:$0xf]
          %v360 = vld [vmem:[%s301 + $0xc] sm:$0xf]
          %v361 = vld [vmem:[%s301 + $0x10] sm:$0xf]
          %v362 = vld [vmem:[%s301 + $0x14] sm:$0xf]
          %v363 = vld [vmem:[%s301 + $0x18] sm:$0xf]
          %v364 = vld [vmem:[%s301 + $0x1c] sm:$0xf]
          %v365 = vld [vmem:[%s301 + $0x20] sm:$0xf]
          %v366 = vld [vmem:[%s301 + $0x24] sm:$0xf]
          %v367 = vld [vmem:[%s301 + $0x28] sm:$0xf]
          %v368 = vld [vmem:[%s301 + $0x2c] sm:$0xf]
          %v369 = vld [vmem:[%s301 + $0x30] sm:$0xf]
          %v370 = vld [vmem:[%s301 + $0x34] sm:$0xf]
          %v371 = vld [vmem:[%s301 + $0x38] sm:$0xf]
          %v372 = vld [vmem:[%s301 + $0x3c] sm:$0xf]
          %v373 = vld [vmem:[%s301 + $0x40] sm:$0xf]
          %v374 = vld [vmem:[%s301 + $0x44] sm:$0xf]
          %v375 = vld [vmem:[%s301 + $0x48] sm:$0xf]
          %v376 = vld [vmem:[%s301 + $0x4c] sm:$0xf]
          %v377 = vld [vmem:[%s301 + $0x50] sm:$0xf]
          %v378 = vld [vmem:[%s301 + $0x54] sm:$0xf]
          %v379 = vld [vmem:[%s301 + $0x58] sm:$0xf]
          %v380 = vld [vmem:[%s301 + $0x5c] sm:$0xf]
          %v381 = vld [vmem:[%s301 + $0x60] sm:$0xf]
          %v382 = vld [vmem:[%s301 + $0x64] sm:$0xf]
          %v383 = vld [vmem:[%s301 + $0x68] sm:$0xf]
          %v384 = vld [vmem:[%s301 + $0x6c] sm:$0xf]
          %v385 = vld [vmem:[%s301 + $0x70] sm:$0xf]
          %v386 = vld [vmem:[%s301 + $0x74] sm:$0xf]
          %v387 = vld [vmem:[%s301 + $0x78] sm:$0xf]
          %v388 = vld [vmem:[%s301 + $0x7c] sm:$0xf]
          %v421 = vunpack.c.l.b16 %v357
          %v422 = vunpack.c.l.b16 %v358
          %v423 = vunpack.c.l.b16 %v359
          %v424 = vunpack.c.l.b16 %v360
          %v425 = vunpack.c.l.b16 %v361
          %v426 = vunpack.c.l.b16 %v362
          %v427 = vunpack.c.l.b16 %v363
          %v428 = vunpack.c.l.b16 %v364
          %v429 = vunpack.c.l.b16 %v365
          %v430 = vunpack.c.l.b16 %v366
          %v431 = vunpack.c.l.b16 %v367
          %v432 = vunpack.c.l.b16 %v368
          %v433 = vunpack.c.l.b16 %v369
          %v434 = vunpack.c.l.b16 %v370
          %v435 = vunpack.c.l.b16 %v371
          %v436 = vunpack.c.l.b16 %v372
          %v437 = vunpack.c.l.b16 %v373
          %v438 = vunpack.c.l.b16 %v374
          %v439 = vunpack.c.l.b16 %v375
          %v440 = vunpack.c.l.b16 %v376
          %v441 = vunpack.c.l.b16 %v377
          %v442 = vunpack.c.l.b16 %v378
          %v443 = vunpack.c.l.b16 %v379
          %v444 = vunpack.c.l.b16 %v380
          %v445 = vunpack.c.l.b16 %v381
          %v446 = vunpack.c.l.b16 %v382
          %v447 = vunpack.c.l.b16 %v383
          %v448 = vunpack.c.l.b16 %v384
          %v449 = vunpack.c.l.b16 %v385
          %v450 = vunpack.c.l.b16 %v386
          %v451 = vunpack.c.l.b16 %v387
          %v452 = vunpack.c.l.b16 %v388
          %v453 = vpack.c.b16 %v422, %v421
          %v454 = vpack.c.b16 %v424, %v423
          %v455 = vpack.c.b16 %v426, %v425
          %v456 = vpack.c.b16 %v428, %v427
          %v457 = vpack.c.b16 %v430, %v429
          %v458 = vpack.c.b16 %v432, %v431
          %v459 = vpack.c.b16 %v434, %v433
          %v460 = vpack.c.b16 %v436, %v435
          %v461 = vpack.c.b16 %v438, %v437
          %v462 = vpack.c.b16 %v440, %v439
          %v463 = vpack.c.b16 %v442, %v441
          %v464 = vpack.c.b16 %v444, %v443
          %v465 = vpack.c.b16 %v446, %v445
          %v466 = vpack.c.b16 %v448, %v447
          %v467 = vpack.c.b16 %v450, %v449
          %v468 = vpack.c.b16 %v452, %v451
          %485 = vmatpush.bf16.msra.mxu0 %v460
          %486 = vmatpush.bf16.msra.mxu0 %v459
          %487 = vmatpush.bf16.msra.mxu0 %v458
          %488 = vmatpush.bf16.msra.mxu0 %v457
          %489 = vmatpush.bf16.msra.mxu0 %v456
          %490 = vmatpush.bf16.msra.mxu0 %v455
          %491 = vmatpush.bf16.msra.mxu0 %v454
          %492 = vmatpush.bf16.msra.mxu0 %v453
          %493 = vmatmul.bf16.gmra.mxu0 %v354
          %v494 = vpop.f32.mrf.mxu0
          %v495 = vadd.f32 0.0, %v494
          %v496 = vpop.f32.mrf.mxu0
          %497 = vdwg.mxu0
          %498 = vmatpush.bf16.msra.mxu0 %v468
          %499 = vmatpush.bf16.msra.mxu0 %v467
          %500 = vmatpush.bf16.msra.mxu0 %v466
          %501 = vmatpush.bf16.msra.mxu0 %v465
          %502 = vmatpush.bf16.msra.mxu0 %v464
          %503 = vmatpush.bf16.msra.mxu0 %v463
          %504 = vmatpush.bf16.msra.mxu0 %v462
          %505 = vmatpush.bf16.msra.mxu0 %v461
          %506 = vmatmul.bf16.gmra.mxu0 %v355
          %v507 = vpop.f32.mrf.mxu0
          %v508 = vadd.f32 %v495, %v507
          %v509 = vpop.f32.mrf.mxu0
          %510 = vdwg.mxu0
          %v511 = vadd.f32 %v356, %v508
          %vm512 = vcmask 254976
          %513 = vst.msk [vmem:[#allocation2] sm:$0x3] %vm512, %v511
        $region48: #{forward.1} parent=39 // pred_fallthru
          _
        // Predicated region
        $region49: #{forward.1} parent=39 // pred_check
          %p514 = pneg %p332
        $region50: #{forward.1} parent=39 // pred_check_branch
          %516 = sbr.rel (%p514) target = $region52
        $region51: #{forward.1} parent=39 // pred_region
          %v517 = vld [vmem:[#allocation2] sm:$0x3]
          %v518 = vld [vmem:[%s2] sm:$0x1]
          %v520 = vperm.slane %v518, 0
          %v522 = vadd.f32 %v517, %v520
          %v523 = vmax.f32 %v522, 0.0
          %vm524 = vcmask 254976
          %525 = vst.msk [vmem:[#allocation2] sm:$0x3] %vm524, %v523
        $region52: #{forward.1} parent=39 // pred_fallthru
          _
        %p526 = scmp.ge.s32.totalorder %s19, 1
        // Predicated region
        $region53: #{forward.1} parent=39 // pred_check
          %p527 = pneg %p526
        $region54: #{forward.1} parent=39 // pred_check_branch
          %529 = sbr.rel (%p527) target = $region56
        $region55: #{forward.1} parent=39 // pred_region
          %s530 = ssub.s32 %s19, 1
          %s531 = smul.u32 %s530, 256
          %s532 = sshra.s32 %s531, 7
          %s533 = sand.u32 %s531, 127
          %s534 = smul.addr %s532, 2
          %s535 = scalar_lea.vmem %s0, %s534
          %v536 = vld [vmem:[%s535] sm:$0xf]
          %v537 = vld [vmem:[#allocation2] sm:$0x3]
          %v538 = vpack.c.bf16 %v537, %v537
          %v539 = vld [vmem:[%s312] sm:$0xf]
          %v540 = vld [vmem:[%s312 + $0x4] sm:$0xf]
          %v541 = vld [vmem:[%s312 + $0x8] sm:$0xf]
          %v542 = vld [vmem:[%s312 + $0xc] sm:$0xf]
          %v543 = vld [vmem:[%s312 + $0x10] sm:$0xf]
          %v544 = vld [vmem:[%s312 + $0x14] sm:$0xf]
          %v545 = vld [vmem:[%s312 + $0x18] sm:$0xf]
          %v546 = vld [vmem:[%s312 + $0x1c] sm:$0xf]
          %v547 = vld [vmem:[%s312 + $0x20] sm:$0xf]
          %v548 = vld [vmem:[%s312 + $0x24] sm:$0xf]
          %v549 = vld [vmem:[%s312 + $0x28] sm:$0xf]
          %v550 = vld [vmem:[%s312 + $0x2c] sm:$0xf]
          %v551 = vld [vmem:[%s312 + $0x30] sm:$0xf]
          %v552 = vld [vmem:[%s312 + $0x34] sm:$0xf]
          %v553 = vld [vmem:[%s312 + $0x38] sm:$0xf]
          %v554 = vld [vmem:[%s312 + $0x3c] sm:$0xf]
          %v555 = vld [vmem:[%s312 + $0x40] sm:$0xf]
          %v556 = vld [vmem:[%s312 + $0x44] sm:$0xf]
          %v557 = vld [vmem:[%s312 + $0x48] sm:$0xf]
          %v558 = vld [vmem:[%s312 + $0x4c] sm:$0xf]
          %v559 = vld [vmem:[%s312 + $0x50] sm:$0xf]
          %v560 = vld [vmem:[%s312 + $0x54] sm:$0xf]
          %v561 = vld [vmem:[%s312 + $0x58] sm:$0xf]
          %v562 = vld [vmem:[%s312 + $0x5c] sm:$0xf]
          %v563 = vld [vmem:[%s312 + $0x60] sm:$0xf]
          %v564 = vld [vmem:[%s312 + $0x64] sm:$0xf]
          %v565 = vld [vmem:[%s312 + $0x68] sm:$0xf]
          %v566 = vld [vmem:[%s312 + $0x6c] sm:$0xf]
          %v567 = vld [vmem:[%s312 + $0x70] sm:$0xf]
          %v568 = vld [vmem:[%s312 + $0x74] sm:$0xf]
          %v569 = vld [vmem:[%s312 + $0x78] sm:$0xf]
          %v570 = vld [vmem:[%s312 + $0x7c] sm:$0xf]
          %v571 = vld [vmem:[%s323] sm:$0x3]
          %v573 = vperm.slane %v571, 0
          %v574 = vperm.slane %v571, 1
          %v609 = vunpack.c.l.b16 %v539
          %v610 = vunpack.c.l.b16 %v540
          %v611 = vunpack.c.l.b16 %v541
          %v612 = vunpack.c.l.b16 %v542
          %v613 = vunpack.c.l.b16 %v543
          %v614 = vunpack.c.l.b16 %v544
          %v615 = vunpack.c.l.b16 %v545
          %v616 = vunpack.c.l.b16 %v546
          %v617 = vunpack.c.l.b16 %v547
          %v618 = vunpack.c.l.b16 %v548
          %v619 = vunpack.c.l.b16 %v549
          %v620 = vunpack.c.l.b16 %v550
          %v621 = vunpack.c.l.b16 %v551
          %v622 = vunpack.c.l.b16 %v552
          %v623 = vunpack.c.l.b16 %v553
          %v624 = vunpack.c.l.b16 %v554
          %v625 = vunpack.c.l.b16 %v555
          %v626 = vunpack.c.l.b16 %v556
          %v627 = vunpack.c.l.b16 %v557
          %v628 = vunpack.c.l.b16 %v558
          %v629 = vunpack.c.l.b16 %v559
          %v630 = vunpack.c.l.b16 %v560
          %v631 = vunpack.c.l.b16 %v561
          %v632 = vunpack.c.l.b16 %v562
          %v633 = vunpack.c.l.b16 %v563
          %v634 = vunpack.c.l.b16 %v564
          %v635 = vunpack.c.l.b16 %v565
          %v636 = vunpack.c.l.b16 %v566
          %v637 = vunpack.c.l.b16 %v567
          %v638 = vunpack.c.l.b16 %v568
          %v639 = vunpack.c.l.b16 %v569
          %v640 = vunpack.c.l.b16 %v570
          %v641 = vpack.c.b16 %v610, %v609
          %v642 = vpack.c.b16 %v612, %v611
          %v643 = vpack.c.b16 %v614, %v613
          %v644 = vpack.c.b16 %v616, %v615
          %v645 = vpack.c.b16 %v618, %v617
          %v646 = vpack.c.b16 %v620, %v619
          %v647 = vpack.c.b16 %v622, %v621
          %v648 = vpack.c.b16 %v624, %v623
          %v649 = vpack.c.b16 %v626, %v625
          %v650 = vpack.c.b16 %v628, %v627
          %v651 = vpack.c.b16 %v630, %v629
          %v652 = vpack.c.b16 %v632, %v631
          %v653 = vpack.c.b16 %v634, %v633
          %v654 = vpack.c.b16 %v636, %v635
          %v655 = vpack.c.b16 %v638, %v637
          %v656 = vpack.c.b16 %v640, %v639
          %vm657 = vcmask 261120
          %v659 = vsel %vm657, %v538, 0
          %v662 = vsel %vm657, %v641, 0
          %v665 = vsel %vm657, %v642, 0
          %v668 = vsel %vm657, %v643, 0
          %v671 = vsel %vm657, %v644, 0
          %v674 = vsel %vm657, %v645, 0
          %v677 = vsel %vm657, %v646, 0
          %v680 = vsel %vm657, %v647, 0
          %v683 = vsel %vm657, %v648, 0
          %v686 = vsel %vm657, %v649, 0
          %v689 = vsel %vm657, %v650, 0
          %v692 = vsel %vm657, %v651, 0
          %v695 = vsel %vm657, %v652, 0
          %v698 = vsel %vm657, %v653, 0
          %v701 = vsel %vm657, %v654, 0
          %v704 = vsel %vm657, %v655, 0
          %v707 = vsel %vm657, %v656, 0
          %709 = vmatpush.bf16.xpose.msra.mxu0 %v683
          %710 = vmatpush.bf16.xpose.msra.mxu0 %v680
          %711 = vmatpush.bf16.xpose.msra.mxu0 %v677
          %712 = vmatpush.bf16.xpose.msra.mxu0 %v674
          %713 = vmatpush.bf16.xpose.msra.mxu0 %v671
          %714 = vmatpush.bf16.xpose.msra.mxu0 %v668
          %715 = vmatpush.bf16.xpose.msra.mxu0 %v665
          %716 = vmatpush.bf16.xpose.msra.mxu0 %v662
          %717 = vmatmul.bf16.gmra.mxu0 %v659
          %v718 = vpop.f32.mrf.mxu0
          %v719 = vadd.f32 %v573, %v718
          %v720 = vpop.f32.mrf.mxu0
          %721 = vdwg.mxu0
          %722 = vmatpush.bf16.xpose.msra.mxu0 %v707
          %723 = vmatpush.bf16.xpose.msra.mxu0 %v704
          %724 = vmatpush.bf16.xpose.msra.mxu0 %v701
          %725 = vmatpush.bf16.xpose.msra.mxu0 %v698
          %726 = vmatpush.bf16.xpose.msra.mxu0 %v695
          %727 = vmatpush.bf16.xpose.msra.mxu0 %v692
          %728 = vmatpush.bf16.xpose.msra.mxu0 %v689
          %729 = vmatpush.bf16.xpose.msra.mxu0 %v686
          %730 = vmatmul.bf16.gmra.mxu0 %v659
          %v731 = vpop.f32.mrf.mxu0
          %v732 = vadd.f32 %v574, %v731
          %v733 = vpop.f32.mrf.mxu0
          %734 = vdwg.mxu0
          %v735 = vxor.u32 %v719, 2147483648
          %v736 = vxor.u32 %v732, 2147483648
          %v737 = vmul.f32 %v735, 1.442695
          %v738 = vpow.pop %v737
          %v739 = vmul.f32 %v736, 1.442695
          %v740 = vpow.pop %v739
          %v741 = vadd.f32 %v738, 1.0
          %v742 = vadd.f32 %v740, 1.0
          %v743 = vrcp.pop %v741
          %v744 = vmul.f32 %v741, %v743
          %v745 = vsub.f32 1.0, %v744
          %v746 = vmul.f32 %v743, %v745
          %v747 = vadd.f32 %v743, %v746
          %vm748 = vweird.f32 %v741
          %vm749 = vweird.f32 %v743
          %vm750 = vmor %vm748, %vm749
          %v751 = vsel %vm750, %v743, %v747
          %v752 = vand.u32 2147483647, %v741
          %vm753 = vcmp.eq.f32.partialorder %v752, 8.507059e+37
          %v754 = vand.u32 %v741, 2147483648
          %v755 = vor.u32 1.1754944e-38, %v754
          %v756 = vsel %vm753, %v755, %v751
          %v757 = vmul.f32 1.0, %v756
          %v758 = vrcp.pop %v742
          %v759 = vmul.f32 %v742, %v758
          %v760 = vsub.f32 1.0, %v759
          %v761 = vmul.f32 %v758, %v760
          %v762 = vadd.f32 %v758, %v761
          %vm763 = vweird.f32 %v742
          %vm764 = vweird.f32 %v758
          %vm765 = vmor %vm763, %vm764
          %v766 = vsel %vm765, %v758, %v762
          %v767 = vand.u32 2147483647, %v742
          %vm768 = vcmp.eq.f32.partialorder %v767, 8.507059e+37
          %v769 = vand.u32 %v742, 2147483648
          %v770 = vor.u32 1.1754944e-38, %v769
          %v771 = vsel %vm768, %v770, %v766
          %v772 = vmul.f32 1.0, %v771
          %v775 = vrot.slane %v772, 6
          %vm776 = vcmask 1041408
          %v777 = vsel %vm776, %v757, %v775
          %v779 = vmul.f32 %v536, %v777
          %780 = vst [vmem:[%s294] sm:$0xf] %v779
        $region56: #{forward.1} parent=39 // pred_fallthru
          _
        %s781 = sand.u32 %s169, 1
        %s782 = scalar_lea.sflag [#allocation4], %s781
        %s783 = sand.u32 %s169, 1
        %s784 = smul.addr %s783, 4
        %s785 = scalar_lea.vmem [#allocation3], %s784
        // Predicated region
        $region57: #{forward.1} parent=39 // pred_check
          %p786 = pneg %p179
        $region58: #{forward.1} parent=39 // pred_check_branch
          %788 = sbr.rel (%p786) target = $region60
        $region59: #{forward.1} parent=39 // pred_region
          %s789 = ssub.s32 %s19, 1
          %p790 = scmp.gt.s32.totalorder %s789, 0
          %s791 = scalar_select %p790, %s789, 0
          %s792 = smul.u32 2, %s791
          %794 = vsyncadd %s782, 0
          %s795 = smul.addr %s792, 2
          %s796 = scalar_lea.hbm %s5, %s795
          %s798 = sshll.u32 %s785, 4
          %s799 = int_to_ptr.vmem [resolvable:$true] %s798
          %s800 = sshll.u32 %s796, 4
          %s801 = int_to_ptr.hbm [resolvable:$true] %s800
          %803 = dma.vmem_to_hbm [thread:$0]  %s799, 64, %s801, %s782
        $region60: #{forward.1} parent=39 // pred_fallthru
          _
      $region40: #{forward.1} parent=5 // pred_fallthru
        _
      %p804 = scmp.le.s32.totalorder 2, %s14
      // Predicated region
      $region61: #{forward.1} parent=5 // pred_check
        %p805 = pneg %p804
      $region62: #{forward.1} parent=5 // pred_check_branch
        %807 = sbr.rel (%p805) target = $region64
      $region63: #{forward.1} parent=5 // pred_region
        %s808 = ssub.s32 %s14, 2
        // Predicated region
        $region65: #{forward.1} parent=63 // pred_check
          %p809 = pneg %p185
        $region66: #{forward.1} parent=63 // pred_check_branch
          %811 = sbr.rel (%p809) target = $region68
        $region67: #{forward.1} parent=63 // pred_region
          %s812 = sand.u32 %s170, 1
          %s813 = scalar_lea.sflag [#allocation4], %s812
          %s814 = sand.u32 %s170, 1
          %s815 = smul.addr %s814, 4
          %s816 = scalar_lea.vmem [#allocation3], %s815
          %818 = dma.done %s813, 64
        $region68: #{forward.1} parent=63 // pred_fallthru
          _
      $region64: #{forward.1} parent=5 // pred_fallthru
        _
    $region6: #{forward.1} parent=1 // loop_footer
      %s18 = sadd.s32 1, %s14
    $region7: #{forward.1} parent=1 // loop_footer_branch
      %13 = sbr.rel target = $region3
    $region8: #{forward.1} parent=1 // loop_exit
      _
    %819 = vsyncpa [#allocation4], 1
    %s820 = scalar_lea.sflag [#allocation4], 1
    %821 = vsyncpa %s820, 1

</llo_original>
